<compile_context>
chip_gen: v7x
topology: tpu7x:2x2x1
jax: 0.10.0
libtpu: 0.0.40
codegen_flags: <defaults>
</compile_context>

<pallas_src>
import functools

import jax
import jax.numpy as jnp
from jax.experimental import pallas as pl
from jax.experimental.pallas import tpu as pltpu


LAYER_SIZES = [3, 3, 3, 3, 3, 1]
_SQRT_2_OVER_PI = 0.7978845608028654


def _round_up(x, m):
    return ((x + m - 1) // m) * m


def _fused_mlp_kernel(params_ref, x_ref, o_ref, *, layer_dims, use_shortcut):
    """Whole layer stack on one lane-dense (features, TM) activation tile.

    params_ref : SMEM f32[P]   -- per layer: W (dout*din, row-major) then b (dout)
    x_ref      : VMEM f32[layer_dims[0],  TM]
    o_ref      : VMEM f32[layer_dims[-1], TM]
    """
    c = jnp.float32(_SQRT_2_OVER_PI)
    # Activation kept as a list of (1, TM) lane-dense rows, resident across layers.
    h = [x_ref[pl.ds(k, 1), :] for k in range(layer_dims[0])]
    off = 0
    for li in range(len(layer_dims) - 1):
        din, dout = layer_dims[li], layer_dims[li + 1]
        new_h = []
        for j in range(dout):
            # y_j = b_j + sum_k W[j,k] * h_k   (scalar-broadcast VPU FMAs, no MXU)
            acc = h[0] * params_ref[off + j * din]
            for k in range(1, din):
                acc = acc + h[k] * params_ref[off + j * din + k]
            acc = acc + params_ref[off + din * dout + j]
            # tanh-approx GELU, exactly as the PyTorch GELU module; y*y*y not y**3.
            g = 0.5 * acc * (1.0 + jnp.tanh(c * (acc + 0.044715 * (acc * acc * acc))))
            new_h.append(g)
        if use_shortcut and din == dout:   # same gate as torch's x.shape == out.shape
            new_h = [new_h[j] + h[j] for j in range(dout)]
        h = new_h
        off += din * dout + dout
    for j in range(layer_dims[-1]):
        o_ref[pl.ds(j, 1), :] = h[j]


def pack_params(params):
    """Pack [(W(out,in), b(out,)), ...] into one flat f32 array + static layer dims.

    Done once at init so no per-call transpose/reshape glue remains on the launch path.
    """
    layer_dims = [params[0][0].shape[1]] + [w.shape[0] for (w, _) in params]
    flat = []
    for (w, b) in params:
        flat.append(jnp.asarray(w, jnp.float32).reshape(-1))
        flat.append(jnp.asarray(b, jnp.float32).reshape(-1))
    return jnp.concatenate(flat), tuple(int(d) for d in layer_dims)


def example_deep_nn_forward(x, packed_params, layer_dims, use_shortcut, tile_m=1024):
    """x: (batch, seq, d_in) with d_in == layer_dims[0]."""
    batch, seq, d_in = x.shape
    assert d_in == layer_dims[0]
    d_out = layer_dims[-1]
    M = batch * seq

    # Lane-dense layout: features on sublanes, rows (M) on lanes; pad M to the tile.
    tm = min(tile_m, _round_up(M, 128))
    m_pad = _round_up(M, tm)
    xt = jnp.transpose(x.reshape(M, d_in).astype(jnp.float32))      # (d_in, M)
    if m_pad != M:
        xt = jnp.pad(xt, ((0, 0), (0, m_pad - M)))

    kern = functools.partial(
        _fused_mlp_kernel,
        layer_dims=tuple(layer_dims),
        use_shortcut=bool(use_shortcut),
    )
    out_t = pl.pallas_call(
        kern,
        out_shape=jax.ShapeDtypeStruct((d_out, m_pad), jnp.float32),
        grid=(m_pad // tm,),
        in_specs=[
            pl.BlockSpec(memory_space=pltpu.MemorySpace.SMEM),      # packed weights/biases
            pl.BlockSpec((d_in, tm), lambda i: (0, i)),             # activation tile
        ],
        out_specs=pl.BlockSpec((d_out, tm), lambda i: (0, i)),      # lane-dense output
        compiler_params=pltpu.CompilerParams(
            dimension_semantics=("parallel",),                      # shards M tiles across TCs on v7x
        ),
    )(packed_params, xt)

    out = jnp.transpose(out_t[:, :M])                               # (M, d_out)
    return out.reshape(batch, seq, d_out)


def init_params(key, layer_sizes):
    params = []
    for i in range(len(layer_sizes) - 1):
        din, dout = layer_sizes[i], layer_sizes[i + 1]
        key, kw, kb = jax.random.split(key, 3)
        bound = 1.0 / jnp.sqrt(jnp.float32(din))
        w = jax.random.uniform(kw, (dout, din), jnp.float32, -bound, bound)
        b = jax.random.uniform(kb, (dout,), jnp.float32, -bound, bound)
        params.append((w, b))
    return params


def reference_forward(x, params, use_shortcut):
    """Pure-JAX reference mirroring the PyTorch forward."""
    h = x.astype(jnp.float32)
    c = jnp.sqrt(jnp.float32(2.0 / jnp.pi))
    for (w, b) in params:
        y = h @ w.T + b
        g = 0.5 * y * (1.0 + jnp.tanh(c * (y + 0.044715 * y ** 3)))
        if use_shortcut and h.shape == g.shape:
            h = h + g
        else:
            h = g
    return h


if __name__ == "__main__":
    key = jax.random.PRNGKey(0)
    kx, kx2, kp = jax.random.split(key, 3)

    params = init_params(kp, LAYER_SIZES)
    packed, layer_dims = pack_params(params)          # packed once, reused across calls

    # Small case (single tile), matching the module: last dim = layer_sizes[0] = 3.
    batch, seq, d_in = 2, 8, LAYER_SIZES[0]
    x = jax.random.uniform(kx, (batch, seq, d_in), jnp.float32)
    out = jax.block_until_ready(example_deep_nn_forward(x, packed, layer_dims, True))
    ref = reference_forward(x, params, True)
    assert out.shape == (batch, seq, LAYER_SIZES[-1])
    assert jnp.allclose(out, ref, atol=1e-5, rtol=1e-5), "mismatch vs reference (shortcut)"

    # Larger case exercising the multi-tile 'parallel' grid + M padding.
    x2 = jax.random.uniform(kx2, (4, 300, d_in), jnp.float32)
    out2 = jax.block_until_ready(example_deep_nn_forward(x2, packed, layer_dims, True))
    ref2 = reference_forward(x2, params, True)
    assert jnp.allclose(out2, ref2, atol=1e-5, rtol=1e-5), "mismatch vs reference (tiled)"

    # No-shortcut path.
    out3 = jax.block_until_ready(example_deep_nn_forward(x, packed, layer_dims, False))
    ref3 = reference_forward(x, params, False)
    assert jnp.allclose(out3, ref3, atol=1e-5, rtol=1e-5), "mismatch vs reference (no shortcut)"

    print("KERNEL_OK")
</pallas_src>

<mosaic_0001>
module attributes {stable_mosaic.version = 11 : i64} {
  func.func @_fused_mlp_kernel(%arg0: i32, %arg1: memref<52xf32, #tpu.memory_space<smem>>, %arg2: memref<3x128xf32, #tpu.memory_space<vmem>>, %arg3: memref<1x128xf32, #tpu.memory_space<vmem>>) attributes {dimension_semantics = [#tpu.dimension_semantics<parallel>], iteration_bounds = array<i64: 1>, scalar_prefetch = 0 : i64, scratch_operands = 0 : i64, tpu.core_type = #tpu.core_type<tc>, window_params = [{transform_indices = @transform_0, window_bounds = array<i64: 52>}, {transform_indices = @transform_1, window_bounds = array<i64: 3, 128>}, {transform_indices = @transform_2, window_bounds = array<i64: 1, 128>}]} {
    %c0 = arith.constant 0 : index
    %c0_0 = arith.constant 0 : index
    %0 = vector.load %arg2[%c0, %c0_0] : memref<3x128xf32, #tpu.memory_space<vmem>>, vector<1x128xf32>
    %c1 = arith.constant 1 : index
    %c0_1 = arith.constant 0 : index
    %1 = vector.load %arg2[%c1, %c0_1] : memref<3x128xf32, #tpu.memory_space<vmem>>, vector<1x128xf32>
    %c2 = arith.constant 2 : index
    %c0_2 = arith.constant 0 : index
    %2 = vector.load %arg2[%c2, %c0_2] : memref<3x128xf32, #tpu.memory_space<vmem>>, vector<1x128xf32>
    %c0_3 = arith.constant 0 : index
    %3 = memref.load %arg1[%c0_3] : memref<52xf32, #tpu.memory_space<smem>>
    %4 = vector.broadcast %3 : f32 to vector<1x128xf32>
    %5 = arith.mulf %0, %4 : vector<1x128xf32>
    %c1_4 = arith.constant 1 : index
    %6 = memref.load %arg1[%c1_4] : memref<52xf32, #tpu.memory_space<smem>>
    %7 = vector.broadcast %6 : f32 to vector<1x128xf32>
    %8 = arith.mulf %1, %7 : vector<1x128xf32>
    %9 = arith.addf %5, %8 : vector<1x128xf32>
    %c2_5 = arith.constant 2 : index
    %10 = memref.load %arg1[%c2_5] : memref<52xf32, #tpu.memory_space<smem>>
    %11 = vector.broadcast %10 : f32 to vector<1x128xf32>
    %12 = arith.mulf %2, %11 : vector<1x128xf32>
    %13 = arith.addf %9, %12 : vector<1x128xf32>
    %c9 = arith.constant 9 : index
    %14 = memref.load %arg1[%c9] : memref<52xf32, #tpu.memory_space<smem>>
    %15 = vector.broadcast %14 : f32 to vector<1x128xf32>
    %16 = arith.addf %13, %15 : vector<1x128xf32>
    %cst = arith.constant 5.000000e-01 : f32
    %17 = vector.broadcast %cst : f32 to vector<1x128xf32>
    %18 = arith.mulf %17, %16 : vector<1x128xf32>
    %19 = arith.mulf %16, %16 : vector<1x128xf32>
    %20 = arith.mulf %19, %16 : vector<1x128xf32>
    %cst_6 = arith.constant 4.471500e-02 : f32
    %21 = vector.broadcast %cst_6 : f32 to vector<1x128xf32>
    %22 = arith.mulf %21, %20 : vector<1x128xf32>
    %23 = arith.addf %16, %22 : vector<1x128xf32>
    %cst_7 = arith.constant 0.797884583 : f32
    %24 = vector.broadcast %cst_7 : f32 to vector<1x128xf32>
    %25 = arith.mulf %24, %23 : vector<1x128xf32>
    %26 = math.tanh %25 : vector<1x128xf32>
    %cst_8 = arith.constant 1.000000e+00 : f32
    %27 = vector.broadcast %cst_8 : f32 to vector<1x128xf32>
    %28 = arith.addf %27, %26 : vector<1x128xf32>
    %29 = arith.mulf %18, %28 : vector<1x128xf32>
    %c3 = arith.constant 3 : index
    %30 = memref.load %arg1[%c3] : memref<52xf32, #tpu.memory_space<smem>>
    %31 = vector.broadcast %30 : f32 to vector<1x128xf32>
    %32 = arith.mulf %0, %31 : vector<1x128xf32>
    %c4 = arith.constant 4 : index
    %33 = memref.load %arg1[%c4] : memref<52xf32, #tpu.memory_space<smem>>
    %34 = vector.broadcast %33 : f32 to vector<1x128xf32>
    %35 = arith.mulf %1, %34 : vector<1x128xf32>
    %36 = arith.addf %32, %35 : vector<1x128xf32>
    %c5 = arith.constant 5 : index
    %37 = memref.load %arg1[%c5] : memref<52xf32, #tpu.memory_space<smem>>
    %38 = vector.broadcast %37 : f32 to vector<1x128xf32>
    %39 = arith.mulf %2, %38 : vector<1x128xf32>
    %40 = arith.addf %36, %39 : vector<1x128xf32>
    %c10 = arith.constant 10 : index
    %41 = memref.load %arg1[%c10] : memref<52xf32, #tpu.memory_space<smem>>
    %42 = vector.broadcast %41 : f32 to vector<1x128xf32>
    %43 = arith.addf %40, %42 : vector<1x128xf32>
    %cst_9 = arith.constant 5.000000e-01 : f32
    %44 = vector.broadcast %cst_9 : f32 to vector<1x128xf32>
    %45 = arith.mulf %44, %43 : vector<1x128xf32>
    %46 = arith.mulf %43, %43 : vector<1x128xf32>
    %47 = arith.mulf %46, %43 : vector<1x128xf32>
    %cst_10 = arith.constant 4.471500e-02 : f32
    %48 = vector.broadcast %cst_10 : f32 to vector<1x128xf32>
    %49 = arith.mulf %48, %47 : vector<1x128xf32>
    %50 = arith.addf %43, %49 : vector<1x128xf32>
    %cst_11 = arith.constant 0.797884583 : f32
    %51 = vector.broadcast %cst_11 : f32 to vector<1x128xf32>
    %52 = arith.mulf %51, %50 : vector<1x128xf32>
    %53 = math.tanh %52 : vector<1x128xf32>
    %cst_12 = arith.constant 1.000000e+00 : f32
    %54 = vector.broadcast %cst_12 : f32 to vector<1x128xf32>
    %55 = arith.addf %54, %53 : vector<1x128xf32>
    %56 = arith.mulf %45, %55 : vector<1x128xf32>
    %c6 = arith.constant 6 : index
    %57 = memref.load %arg1[%c6] : memref<52xf32, #tpu.memory_space<smem>>
    %58 = vector.broadcast %57 : f32 to vector<1x128xf32>
    %59 = arith.mulf %0, %58 : vector<1x128xf32>
    %c7 = arith.constant 7 : index
    %60 = memref.load %arg1[%c7] : memref<52xf32, #tpu.memory_space<smem>>
    %61 = vector.broadcast %60 : f32 to vector<1x128xf32>
    %62 = arith.mulf %1, %61 : vector<1x128xf32>
    %63 = arith.addf %59, %62 : vector<1x128xf32>
    %c8 = arith.constant 8 : index
    %64 = memref.load %arg1[%c8] : memref<52xf32, #tpu.memory_space<smem>>
    %65 = vector.broadcast %64 : f32 to vector<1x128xf32>
    %66 = arith.mulf %2, %65 : vector<1x128xf32>
    %67 = arith.addf %63, %66 : vector<1x128xf32>
    %c11 = arith.constant 11 : index
    %68 = memref.load %arg1[%c11] : memref<52xf32, #tpu.memory_space<smem>>
    %69 = vector.broadcast %68 : f32 to vector<1x128xf32>
    %70 = arith.addf %67, %69 : vector<1x128xf32>
    %cst_13 = arith.constant 5.000000e-01 : f32
    %71 = vector.broadcast %cst_13 : f32 to vector<1x128xf32>
    %72 = arith.mulf %71, %70 : vector<1x128xf32>
    %73 = arith.mulf %70, %70 : vector<1x128xf32>
    %74 = arith.mulf %73, %70 : vector<1x128xf32>
    %cst_14 = arith.constant 4.471500e-02 : f32
    %75 = vector.broadcast %cst_14 : f32 to vector<1x128xf32>
    %76 = arith.mulf %75, %74 : vector<1x128xf32>
    %77 = arith.addf %70, %76 : vector<1x128xf32>
    %cst_15 = arith.constant 0.797884583 : f32
    %78 = vector.broadcast %cst_15 : f32 to vector<1x128xf32>
    %79 = arith.mulf %78, %77 : vector<1x128xf32>
    %80 = math.tanh %79 : vector<1x128xf32>
    %cst_16 = arith.constant 1.000000e+00 : f32
    %81 = vector.broadcast %cst_16 : f32 to vector<1x128xf32>
    %82 = arith.addf %81, %80 : vector<1x128xf32>
    %83 = arith.mulf %72, %82 : vector<1x128xf32>
    %84 = arith.addf %29, %0 : vector<1x128xf32>
    %85 = arith.addf %56, %1 : vector<1x128xf32>
    %86 = arith.addf %83, %2 : vector<1x128xf32>
    %c12 = arith.constant 12 : index
    %87 = memref.load %arg1[%c12] : memref<52xf32, #tpu.memory_space<smem>>
    %88 = vector.broadcast %87 : f32 to vector<1x128xf32>
    %89 = arith.mulf %84, %88 : vector<1x128xf32>
    %c13 = arith.constant 13 : index
    %90 = memref.load %arg1[%c13] : memref<52xf32, #tpu.memory_space<smem>>
    %91 = vector.broadcast %90 : f32 to vector<1x128xf32>
    %92 = arith.mulf %85, %91 : vector<1x128xf32>
    %93 = arith.addf %89, %92 : vector<1x128xf32>
    %c14 = arith.constant 14 : index
    %94 = memref.load %arg1[%c14] : memref<52xf32, #tpu.memory_space<smem>>
    %95 = vector.broadcast %94 : f32 to vector<1x128xf32>
    %96 = arith.mulf %86, %95 : vector<1x128xf32>
    %97 = arith.addf %93, %96 : vector<1x128xf32>
    %c21 = arith.constant 21 : index
    %98 = memref.load %arg1[%c21] : memref<52xf32, #tpu.memory_space<smem>>
    %99 = vector.broadcast %98 : f32 to vector<1x128xf32>
    %100 = arith.addf %97, %99 : vector<1x128xf32>
    %cst_17 = arith.constant 5.000000e-01 : f32
    %101 = vector.broadcast %cst_17 : f32 to vector<1x128xf32>
    %102 = arith.mulf %101, %100 : vector<1x128xf32>
    %103 = arith.mulf %100, %100 : vector<1x128xf32>
    %104 = arith.mulf %103, %100 : vector<1x128xf32>
    %cst_18 = arith.constant 4.471500e-02 : f32
    %105 = vector.broadcast %cst_18 : f32 to vector<1x128xf32>
    %106 = arith.mulf %105, %104 : vector<1x128xf32>
    %107 = arith.addf %100, %106 : vector<1x128xf32>
    %cst_19 = arith.constant 0.797884583 : f32
    %108 = vector.broadcast %cst_19 : f32 to vector<1x128xf32>
    %109 = arith.mulf %108, %107 : vector<1x128xf32>
    %110 = math.tanh %109 : vector<1x128xf32>
    %cst_20 = arith.constant 1.000000e+00 : f32
    %111 = vector.broadcast %cst_20 : f32 to vector<1x128xf32>
    %112 = arith.addf %111, %110 : vector<1x128xf32>
    %113 = arith.mulf %102, %112 : vector<1x128xf32>
    %c15 = arith.constant 15 : index
    %114 = memref.load %arg1[%c15] : memref<52xf32, #tpu.memory_space<smem>>
    %115 = vector.broadcast %114 : f32 to vector<1x128xf32>
    %116 = arith.mulf %84, %115 : vector<1x128xf32>
    %c16 = arith.constant 16 : index
    %117 = memref.load %arg1[%c16] : memref<52xf32, #tpu.memory_space<smem>>
    %118 = vector.broadcast %117 : f32 to vector<1x128xf32>
    %119 = arith.mulf %85, %118 : vector<1x128xf32>
    %120 = arith.addf %116, %119 : vector<1x128xf32>
    %c17 = arith.constant 17 : index
    %121 = memref.load %arg1[%c17] : memref<52xf32, #tpu.memory_space<smem>>
    %122 = vector.broadcast %121 : f32 to vector<1x128xf32>
    %123 = arith.mulf %86, %122 : vector<1x128xf32>
    %124 = arith.addf %120, %123 : vector<1x128xf32>
    %c22 = arith.constant 22 : index
    %125 = memref.load %arg1[%c22] : memref<52xf32, #tpu.memory_space<smem>>
    %126 = vector.broadcast %125 : f32 to vector<1x128xf32>
    %127 = arith.addf %124, %126 : vector<1x128xf32>
    %cst_21 = arith.constant 5.000000e-01 : f32
    %128 = vector.broadcast %cst_21 : f32 to vector<1x128xf32>
    %129 = arith.mulf %128, %127 : vector<1x128xf32>
    %130 = arith.mulf %127, %127 : vector<1x128xf32>
    %131 = arith.mulf %130, %127 : vector<1x128xf32>
    %cst_22 = arith.constant 4.471500e-02 : f32
    %132 = vector.broadcast %cst_22 : f32 to vector<1x128xf32>
    %133 = arith.mulf %132, %131 : vector<1x128xf32>
    %134 = arith.addf %127, %133 : vector<1x128xf32>
    %cst_23 = arith.constant 0.797884583 : f32
    %135 = vector.broadcast %cst_23 : f32 to vector<1x128xf32>
    %136 = arith.mulf %135, %134 : vector<1x128xf32>
    %137 = math.tanh %136 : vector<1x128xf32>
    %cst_24 = arith.constant 1.000000e+00 : f32
    %138 = vector.broadcast %cst_24 : f32 to vector<1x128xf32>
    %139 = arith.addf %138, %137 : vector<1x128xf32>
    %140 = arith.mulf %129, %139 : vector<1x128xf32>
    %c18 = arith.constant 18 : index
    %141 = memref.load %arg1[%c18] : memref<52xf32, #tpu.memory_space<smem>>
    %142 = vector.broadcast %141 : f32 to vector<1x128xf32>
    %143 = arith.mulf %84, %142 : vector<1x128xf32>
    %c19 = arith.constant 19 : index
    %144 = memref.load %arg1[%c19] : memref<52xf32, #tpu.memory_space<smem>>
    %145 = vector.broadcast %144 : f32 to vector<1x128xf32>
    %146 = arith.mulf %85, %145 : vector<1x128xf32>
    %147 = arith.addf %143, %146 : vector<1x128xf32>
    %c20 = arith.constant 20 : index
    %148 = memref.load %arg1[%c20] : memref<52xf32, #tpu.memory_space<smem>>
    %149 = vector.broadcast %148 : f32 to vector<1x128xf32>
    %150 = arith.mulf %86, %149 : vector<1x128xf32>
    %151 = arith.addf %147, %150 : vector<1x128xf32>
    %c23 = arith.constant 23 : index
    %152 = memref.load %arg1[%c23] : memref<52xf32, #tpu.memory_space<smem>>
    %153 = vector.broadcast %152 : f32 to vector<1x128xf32>
    %154 = arith.addf %151, %153 : vector<1x128xf32>
    %cst_25 = arith.constant 5.000000e-01 : f32
    %155 = vector.broadcast %cst_25 : f32 to vector<1x128xf32>
    %156 = arith.mulf %155, %154 : vector<1x128xf32>
    %157 = arith.mulf %154, %154 : vector<1x128xf32>
    %158 = arith.mulf %157, %154 : vector<1x128xf32>
    %cst_26 = arith.constant 4.471500e-02 : f32
    %159 = vector.broadcast %cst_26 : f32 to vector<1x128xf32>
    %160 = arith.mulf %159, %158 : vector<1x128xf32>
    %161 = arith.addf %154, %160 : vector<1x128xf32>
    %cst_27 = arith.constant 0.797884583 : f32
    %162 = vector.broadcast %cst_27 : f32 to vector<1x128xf32>
    %163 = arith.mulf %162, %161 : vector<1x128xf32>
    %164 = math.tanh %163 : vector<1x128xf32>
    %cst_28 = arith.constant 1.000000e+00 : f32
    %165 = vector.broadcast %cst_28 : f32 to vector<1x128xf32>
    %166 = arith.addf %165, %164 : vector<1x128xf32>
    %167 = arith.mulf %156, %166 : vector<1x128xf32>
    %168 = arith.addf %113, %84 : vector<1x128xf32>
    %169 = arith.addf %140, %85 : vector<1x128xf32>
    %170 = arith.addf %167, %86 : vector<1x128xf32>
    %c24 = arith.constant 24 : index
    %171 = memref.load %arg1[%c24] : memref<52xf32, #tpu.memory_space<smem>>
    %172 = vector.broadcast %171 : f32 to vector<1x128xf32>
    %173 = arith.mulf %168, %172 : vector<1x128xf32>
    %c25 = arith.constant 25 : index
    %174 = memref.load %arg1[%c25] : memref<52xf32, #tpu.memory_space<smem>>
    %175 = vector.broadcast %174 : f32 to vector<1x128xf32>
    %176 = arith.mulf %169, %175 : vector<1x128xf32>
    %177 = arith.addf %173, %176 : vector<1x128xf32>
    %c26 = arith.constant 26 : index
    %178 = memref.load %arg1[%c26] : memref<52xf32, #tpu.memory_space<smem>>
    %179 = vector.broadcast %178 : f32 to vector<1x128xf32>
    %180 = arith.mulf %170, %179 : vector<1x128xf32>
    %181 = arith.addf %177, %180 : vector<1x128xf32>
    %c33 = arith.constant 33 : index
    %182 = memref.load %arg1[%c33] : memref<52xf32, #tpu.memory_space<smem>>
    %183 = vector.broadcast %182 : f32 to vector<1x128xf32>
    %184 = arith.addf %181, %183 : vector<1x128xf32>
    %cst_29 = arith.constant 5.000000e-01 : f32
    %185 = vector.broadcast %cst_29 : f32 to vector<1x128xf32>
    %186 = arith.mulf %185, %184 : vector<1x128xf32>
    %187 = arith.mulf %184, %184 : vector<1x128xf32>
    %188 = arith.mulf %187, %184 : vector<1x128xf32>
    %cst_30 = arith.constant 4.471500e-02 : f32
    %189 = vector.broadcast %cst_30 : f32 to vector<1x128xf32>
    %190 = arith.mulf %189, %188 : vector<1x128xf32>
    %191 = arith.addf %184, %190 : vector<1x128xf32>
    %cst_31 = arith.constant 0.797884583 : f32
    %192 = vector.broadcast %cst_31 : f32 to vector<1x128xf32>
    %193 = arith.mulf %192, %191 : vector<1x128xf32>
    %194 = math.tanh %193 : vector<1x128xf32>
    %cst_32 = arith.constant 1.000000e+00 : f32
    %195 = vector.broadcast %cst_32 : f32 to vector<1x128xf32>
    %196 = arith.addf %195, %194 : vector<1x128xf32>
    %197 = arith.mulf %186, %196 : vector<1x128xf32>
    %c27 = arith.constant 27 : index
    %198 = memref.load %arg1[%c27] : memref<52xf32, #tpu.memory_space<smem>>
    %199 = vector.broadcast %198 : f32 to vector<1x128xf32>
    %200 = arith.mulf %168, %199 : vector<1x128xf32>
    %c28 = arith.constant 28 : index
    %201 = memref.load %arg1[%c28] : memref<52xf32, #tpu.memory_space<smem>>
    %202 = vector.broadcast %201 : f32 to vector<1x128xf32>
    %203 = arith.mulf %169, %202 : vector<1x128xf32>
    %204 = arith.addf %200, %203 : vector<1x128xf32>
    %c29 = arith.constant 29 : index
    %205 = memref.load %arg1[%c29] : memref<52xf32, #tpu.memory_space<smem>>
    %206 = vector.broadcast %205 : f32 to vector<1x128xf32>
    %207 = arith.mulf %170, %206 : vector<1x128xf32>
    %208 = arith.addf %204, %207 : vector<1x128xf32>
    %c34 = arith.constant 34 : index
    %209 = memref.load %arg1[%c34] : memref<52xf32, #tpu.memory_space<smem>>
    %210 = vector.broadcast %209 : f32 to vector<1x128xf32>
    %211 = arith.addf %208, %210 : vector<1x128xf32>
    %cst_33 = arith.constant 5.000000e-01 : f32
    %212 = vector.broadcast %cst_33 : f32 to vector<1x128xf32>
    %213 = arith.mulf %212, %211 : vector<1x128xf32>
    %214 = arith.mulf %211, %211 : vector<1x128xf32>
    %215 = arith.mulf %214, %211 : vector<1x128xf32>
    %cst_34 = arith.constant 4.471500e-02 : f32
    %216 = vector.broadcast %cst_34 : f32 to vector<1x128xf32>
    %217 = arith.mulf %216, %215 : vector<1x128xf32>
    %218 = arith.addf %211, %217 : vector<1x128xf32>
    %cst_35 = arith.constant 0.797884583 : f32
    %219 = vector.broadcast %cst_35 : f32 to vector<1x128xf32>
    %220 = arith.mulf %219, %218 : vector<1x128xf32>
    %221 = math.tanh %220 : vector<1x128xf32>
    %cst_36 = arith.constant 1.000000e+00 : f32
    %222 = vector.broadcast %cst_36 : f32 to vector<1x128xf32>
    %223 = arith.addf %222, %221 : vector<1x128xf32>
    %224 = arith.mulf %213, %223 : vector<1x128xf32>
    %c30 = arith.constant 30 : index
    %225 = memref.load %arg1[%c30] : memref<52xf32, #tpu.memory_space<smem>>
    %226 = vector.broadcast %225 : f32 to vector<1x128xf32>
    %227 = arith.mulf %168, %226 : vector<1x128xf32>
    %c31 = arith.constant 31 : index
    %228 = memref.load %arg1[%c31] : memref<52xf32, #tpu.memory_space<smem>>
    %229 = vector.broadcast %228 : f32 to vector<1x128xf32>
    %230 = arith.mulf %169, %229 : vector<1x128xf32>
    %231 = arith.addf %227, %230 : vector<1x128xf32>
    %c32 = arith.constant 32 : index
    %232 = memref.load %arg1[%c32] : memref<52xf32, #tpu.memory_space<smem>>
    %233 = vector.broadcast %232 : f32 to vector<1x128xf32>
    %234 = arith.mulf %170, %233 : vector<1x128xf32>
    %235 = arith.addf %231, %234 : vector<1x128xf32>
    %c35 = arith.constant 35 : index
    %236 = memref.load %arg1[%c35] : memref<52xf32, #tpu.memory_space<smem>>
    %237 = vector.broadcast %236 : f32 to vector<1x128xf32>
    %238 = arith.addf %235, %237 : vector<1x128xf32>
    %cst_37 = arith.constant 5.000000e-01 : f32
    %239 = vector.broadcast %cst_37 : f32 to vector<1x128xf32>
    %240 = arith.mulf %239, %238 : vector<1x128xf32>
    %241 = arith.mulf %238, %238 : vector<1x128xf32>
    %242 = arith.mulf %241, %238 : vector<1x128xf32>
    %cst_38 = arith.constant 4.471500e-02 : f32
    %243 = vector.broadcast %cst_38 : f32 to vector<1x128xf32>
    %244 = arith.mulf %243, %242 : vector<1x128xf32>
    %245 = arith.addf %238, %244 : vector<1x128xf32>
    %cst_39 = arith.constant 0.797884583 : f32
    %246 = vector.broadcast %cst_39 : f32 to vector<1x128xf32>
    %247 = arith.mulf %246, %245 : vector<1x128xf32>
    %248 = math.tanh %247 : vector<1x128xf32>
    %cst_40 = arith.constant 1.000000e+00 : f32
    %249 = vector.broadcast %cst_40 : f32 to vector<1x128xf32>
    %250 = arith.addf %249, %248 : vector<1x128xf32>
    %251 = arith.mulf %240, %250 : vector<1x128xf32>
    %252 = arith.addf %197, %168 : vector<1x128xf32>
    %253 = arith.addf %224, %169 : vector<1x128xf32>
    %254 = arith.addf %251, %170 : vector<1x128xf32>
    %c36 = arith.constant 36 : index
    %255 = memref.load %arg1[%c36] : memref<52xf32, #tpu.memory_space<smem>>
    %256 = vector.broadcast %255 : f32 to vector<1x128xf32>
    %257 = arith.mulf %252, %256 : vector<1x128xf32>
    %c37 = arith.constant 37 : index
    %258 = memref.load %arg1[%c37] : memref<52xf32, #tpu.memory_space<smem>>
    %259 = vector.broadcast %258 : f32 to vector<1x128xf32>
    %260 = arith.mulf %253, %259 : vector<1x128xf32>
    %261 = arith.addf %257, %260 : vector<1x128xf32>
    %c38 = arith.constant 38 : index
    %262 = memref.load %arg1[%c38] : memref<52xf32, #tpu.memory_space<smem>>
    %263 = vector.broadcast %262 : f32 to vector<1x128xf32>
    %264 = arith.mulf %254, %263 : vector<1x128xf32>
    %265 = arith.addf %261, %264 : vector<1x128xf32>
    %c45 = arith.constant 45 : index
    %266 = memref.load %arg1[%c45] : memref<52xf32, #tpu.memory_space<smem>>
    %267 = vector.broadcast %266 : f32 to vector<1x128xf32>
    %268 = arith.addf %265, %267 : vector<1x128xf32>
    %cst_41 = arith.constant 5.000000e-01 : f32
    %269 = vector.broadcast %cst_41 : f32 to vector<1x128xf32>
    %270 = arith.mulf %269, %268 : vector<1x128xf32>
    %271 = arith.mulf %268, %268 : vector<1x128xf32>
    %272 = arith.mulf %271, %268 : vector<1x128xf32>
    %cst_42 = arith.constant 4.471500e-02 : f32
    %273 = vector.broadcast %cst_42 : f32 to vector<1x128xf32>
    %274 = arith.mulf %273, %272 : vector<1x128xf32>
    %275 = arith.addf %268, %274 : vector<1x128xf32>
    %cst_43 = arith.constant 0.797884583 : f32
    %276 = vector.broadcast %cst_43 : f32 to vector<1x128xf32>
    %277 = arith.mulf %276, %275 : vector<1x128xf32>
    %278 = math.tanh %277 : vector<1x128xf32>
    %cst_44 = arith.constant 1.000000e+00 : f32
    %279 = vector.broadcast %cst_44 : f32 to vector<1x128xf32>
    %280 = arith.addf %279, %278 : vector<1x128xf32>
    %281 = arith.mulf %270, %280 : vector<1x128xf32>
    %c39 = arith.constant 39 : index
    %282 = memref.load %arg1[%c39] : memref<52xf32, #tpu.memory_space<smem>>
    %283 = vector.broadcast %282 : f32 to vector<1x128xf32>
    %284 = arith.mulf %252, %283 : vector<1x128xf32>
    %c40 = arith.constant 40 : index
    %285 = memref.load %arg1[%c40] : memref<52xf32, #tpu.memory_space<smem>>
    %286 = vector.broadcast %285 : f32 to vector<1x128xf32>
    %287 = arith.mulf %253, %286 : vector<1x128xf32>
    %288 = arith.addf %284, %287 : vector<1x128xf32>
    %c41 = arith.constant 41 : index
    %289 = memref.load %arg1[%c41] : memref<52xf32, #tpu.memory_space<smem>>
    %290 = vector.broadcast %289 : f32 to vector<1x128xf32>
    %291 = arith.mulf %254, %290 : vector<1x128xf32>
    %292 = arith.addf %288, %291 : vector<1x128xf32>
    %c46 = arith.constant 46 : index
    %293 = memref.load %arg1[%c46] : memref<52xf32, #tpu.memory_space<smem>>
    %294 = vector.broadcast %293 : f32 to vector<1x128xf32>
    %295 = arith.addf %292, %294 : vector<1x128xf32>
    %cst_45 = arith.constant 5.000000e-01 : f32
    %296 = vector.broadcast %cst_45 : f32 to vector<1x128xf32>
    %297 = arith.mulf %296, %295 : vector<1x128xf32>
    %298 = arith.mulf %295, %295 : vector<1x128xf32>
    %299 = arith.mulf %298, %295 : vector<1x128xf32>
    %cst_46 = arith.constant 4.471500e-02 : f32
    %300 = vector.broadcast %cst_46 : f32 to vector<1x128xf32>
    %301 = arith.mulf %300, %299 : vector<1x128xf32>
    %302 = arith.addf %295, %301 : vector<1x128xf32>
    %cst_47 = arith.constant 0.797884583 : f32
    %303 = vector.broadcast %cst_47 : f32 to vector<1x128xf32>
    %304 = arith.mulf %303, %302 : vector<1x128xf32>
    %305 = math.tanh %304 : vector<1x128xf32>
    %cst_48 = arith.constant 1.000000e+00 : f32
    %306 = vector.broadcast %cst_48 : f32 to vector<1x128xf32>
    %307 = arith.addf %306, %305 : vector<1x128xf32>
    %308 = arith.mulf %297, %307 : vector<1x128xf32>
    %c42 = arith.constant 42 : index
    %309 = memref.load %arg1[%c42] : memref<52xf32, #tpu.memory_space<smem>>
    %310 = vector.broadcast %309 : f32 to vector<1x128xf32>
    %311 = arith.mulf %252, %310 : vector<1x128xf32>
    %c43 = arith.constant 43 : index
    %312 = memref.load %arg1[%c43] : memref<52xf32, #tpu.memory_space<smem>>
    %313 = vector.broadcast %312 : f32 to vector<1x128xf32>
    %314 = arith.mulf %253, %313 : vector<1x128xf32>
    %315 = arith.addf %311, %314 : vector<1x128xf32>
    %c44 = arith.constant 44 : index
    %316 = memref.load %arg1[%c44] : memref<52xf32, #tpu.memory_space<smem>>
    %317 = vector.broadcast %316 : f32 to vector<1x128xf32>
    %318 = arith.mulf %254, %317 : vector<1x128xf32>
    %319 = arith.addf %315, %318 : vector<1x128xf32>
    %c47 = arith.constant 47 : index
    %320 = memref.load %arg1[%c47] : memref<52xf32, #tpu.memory_space<smem>>
    %321 = vector.broadcast %320 : f32 to vector<1x128xf32>
    %322 = arith.addf %319, %321 : vector<1x128xf32>
    %cst_49 = arith.constant 5.000000e-01 : f32
    %323 = vector.broadcast %cst_49 : f32 to vector<1x128xf32>
    %324 = arith.mulf %323, %322 : vector<1x128xf32>
    %325 = arith.mulf %322, %322 : vector<1x128xf32>
    %326 = arith.mulf %325, %322 : vector<1x128xf32>
    %cst_50 = arith.constant 4.471500e-02 : f32
    %327 = vector.broadcast %cst_50 : f32 to vector<1x128xf32>
    %328 = arith.mulf %327, %326 : vector<1x128xf32>
    %329 = arith.addf %322, %328 : vector<1x128xf32>
    %cst_51 = arith.constant 0.797884583 : f32
    %330 = vector.broadcast %cst_51 : f32 to vector<1x128xf32>
    %331 = arith.mulf %330, %329 : vector<1x128xf32>
    %332 = math.tanh %331 : vector<1x128xf32>
    %cst_52 = arith.constant 1.000000e+00 : f32
    %333 = vector.broadcast %cst_52 : f32 to vector<1x128xf32>
    %334 = arith.addf %333, %332 : vector<1x128xf32>
    %335 = arith.mulf %324, %334 : vector<1x128xf32>
    %336 = arith.addf %281, %252 : vector<1x128xf32>
    %337 = arith.addf %308, %253 : vector<1x128xf32>
    %338 = arith.addf %335, %254 : vector<1x128xf32>
    %c48 = arith.constant 48 : index
    %339 = memref.load %arg1[%c48] : memref<52xf32, #tpu.memory_space<smem>>
    %340 = vector.broadcast %339 : f32 to vector<1x128xf32>
    %341 = arith.mulf %336, %340 : vector<1x128xf32>
    %c49 = arith.constant 49 : index
    %342 = memref.load %arg1[%c49] : memref<52xf32, #tpu.memory_space<smem>>
    %343 = vector.broadcast %342 : f32 to vector<1x128xf32>
    %344 = arith.mulf %337, %343 : vector<1x128xf32>
    %345 = arith.addf %341, %344 : vector<1x128xf32>
    %c50 = arith.constant 50 : index
    %346 = memref.load %arg1[%c50] : memref<52xf32, #tpu.memory_space<smem>>
    %347 = vector.broadcast %346 : f32 to vector<1x128xf32>
    %348 = arith.mulf %338, %347 : vector<1x128xf32>
    %349 = arith.addf %345, %348 : vector<1x128xf32>
    %c51 = arith.constant 51 : index
    %350 = memref.load %arg1[%c51] : memref<52xf32, #tpu.memory_space<smem>>
    %351 = vector.broadcast %350 : f32 to vector<1x128xf32>
    %352 = arith.addf %349, %351 : vector<1x128xf32>
    %cst_53 = arith.constant 5.000000e-01 : f32
    %353 = vector.broadcast %cst_53 : f32 to vector<1x128xf32>
    %354 = arith.mulf %353, %352 : vector<1x128xf32>
    %355 = arith.mulf %352, %352 : vector<1x128xf32>
    %356 = arith.mulf %355, %352 : vector<1x128xf32>
    %cst_54 = arith.constant 4.471500e-02 : f32
    %357 = vector.broadcast %cst_54 : f32 to vector<1x128xf32>
    %358 = arith.mulf %357, %356 : vector<1x128xf32>
    %359 = arith.addf %352, %358 : vector<1x128xf32>
    %cst_55 = arith.constant 0.797884583 : f32
    %360 = vector.broadcast %cst_55 : f32 to vector<1x128xf32>
    %361 = arith.mulf %360, %359 : vector<1x128xf32>
    %362 = math.tanh %361 : vector<1x128xf32>
    %cst_56 = arith.constant 1.000000e+00 : f32
    %363 = vector.broadcast %cst_56 : f32 to vector<1x128xf32>
    %364 = arith.addf %363, %362 : vector<1x128xf32>
    %365 = arith.mulf %354, %364 : vector<1x128xf32>
    %c0_57 = arith.constant 0 : index
    %c0_58 = arith.constant 0 : index
    %366 = vector.load %arg3[%c0_57, %c0_58] : memref<1x128xf32, #tpu.memory_space<vmem>>, vector<1x128xf32>
    tpu.vector_store %arg3[%c0_57, %c0_58], %365 {strides = array<i32>} : memref<1x128xf32, #tpu.memory_space<vmem>>, vector<1x128xf32>,
    return
  }
  func.func @transform_0(%arg0: i32) -> i32 {
    %c0_i32 = arith.constant 0 : i32
    %c0_i32_0 = arith.constant 0 : i32
    return %c0_i32 : i32
  }
  func.func @transform_1(%arg0: i32) -> (i32, i32) {
    %c0_i32 = arith.constant 0 : i32
    %c0_i32_0 = arith.constant 0 : i32
    return %c0_i32, %arg0 : i32, i32
  }
  func.func @transform_2(%arg0: i32) -> (i32, i32) {
    %c0_i32 = arith.constant 0 : i32
    %c0_i32_0 = arith.constant 0 : i32
    return %c0_i32, %arg0 : i32, i32
  }
}

</mosaic_0001>

<llo_original>
// kernel: tpu_custom_call.1
$region0: #{tpu_custom_call.1}
  #allocation0 [shape = 'u32[]', space=smem, size = 0x4, offset = 0x4, fixed_abs, tag = 'smem constant byte address 0x4 - core index']
  #allocation1 [shape = 'u32[144,128]{1,0:T(1,128)}', space=vmem, size = 0x12000, scoped, tag = 'internal scratch']
  %s0 = inlined_call_operand.hbm [shape: f32[52], index: 0, kind: input, shape index: {}]
  %s1 = inlined_call_operand.hbm [shape: f32[3,128], index: 1, kind: input, shape index: {}]
  %s2 = inlined_call_operand.hbm [shape: f32[1,128], index: 2, kind: output, shape index: {}]
  %s3 = sld [smem:[#allocation0]]
  $region26: #{tpu_custom_call.1} parent=0
    _
  %s5 = ssub.s32 1, %s3
  %s6 = scalar_select 0, %s5, %s3
  $region1: #{tpu_custom_call.1} parent=0
    #allocation2 [shape = 'u8[512]{0}', space=smem, size = 0x200, scoped, tag = 'input window, operand 0, single buffered']
    #allocation3 [shape = 's32[1]{0}', space=sflag, size = 0x4, scoped, tag = 'scoped memory for tpu_custom_call.1']
    #allocation4 [shape = 's32[1]{0}', space=sflag, size = 0x4, scoped, tag = 'scoped memory for tpu_custom_call.1']
    #allocation5 [shape = 's32[1]{0}', space=sflag, size = 0x4, scoped, tag = 'scoped memory for tpu_custom_call.1']
    #allocation6 [shape = 'u8[2048]{0}', space=vmem, size = 0x800, scoped, tag = 'input window, operand 1, single buffered']
    #allocation7 [shape = 'u8[512]{0}', space=vmem, size = 0x400, scoped, tag = 'output window, operand 0, single buffered']
    %7 = vsyncpa [#allocation5], 0
    %8 = vsyncpa [#allocation3], 0
    %9 = vsyncpa [#allocation4], 0
    // Predicated region
    $region2: #{tpu_custom_call.1} parent=1 // pred_check
      _
    $region3: #{tpu_custom_call.1} parent=1 // pred_check_branch
      %11 = sbr.rel (0) target = $region5
    $region4: #{tpu_custom_call.1} parent=1 // pred_region
      %s13 = ssub.s32 16, 16
      %14 = vsyncadd [#allocation5], %s13
      %17 = dma.hbm_to_smem %s0, 16, [#allocation2], [#allocation5]
    $region5: #{tpu_custom_call.1} parent=1 // pred_fallthru
      _
    // Predicated region
    $region6: #{tpu_custom_call.1} parent=1 // pred_check
      _
    $region7: #{tpu_custom_call.1} parent=1 // pred_check_branch
      %19 = sbr.rel (0) target = $region9
    $region8: #{tpu_custom_call.1} parent=1 // pred_region
      %s21 = ssub.s32 64, 64
      %22 = vsyncadd [#allocation3], %s21
      %s24 = sshll.u32 [#allocation6], 4
      %s25 = int_to_ptr.vmem [resolvable:$true] %s24
      %27 = dma.hbm_to_vmem [thread:$0]  %s1, 64, %s25, [#allocation3]
    $region9: #{tpu_custom_call.1} parent=1 // pred_fallthru
      _
    // Predicated region
    $region10: #{tpu_custom_call.1} parent=1 // pred_check
      _
    $region11: #{tpu_custom_call.1} parent=1 // pred_check_branch
      %29 = sbr.rel (0) target = $region13
    $region12: #{tpu_custom_call.1} parent=1 // pred_region
      %30 = dma.done [#allocation5], 16
    $region13: #{tpu_custom_call.1} parent=1 // pred_fallthru
      _
    // Predicated region
    $region14: #{tpu_custom_call.1} parent=1 // pred_check
      _
    $region15: #{tpu_custom_call.1} parent=1 // pred_check_branch
      %32 = sbr.rel (0) target = $region17
    $region16: #{tpu_custom_call.1} parent=1 // pred_region
      %33 = dma.done [#allocation3], 64
    $region17: #{tpu_custom_call.1} parent=1 // pred_fallthru
      _
    %34 = sfence
    %v35 = vld [vmem:[#allocation6] sm:$0x1]
    %v36 = vld [vmem:[#allocation6 + $0x1] sm:$0x1]
    %v37 = vld [vmem:[#allocation6 + $0x2] sm:$0x1]
    %s38 = sld [smem:[#allocation2]]
    %v39 = vstv %s38
    %v40 = vmul.f32 %v35, %v39
    %s41 = sld [smem:[#allocation2 + $0x1]]
    %v42 = vstv %s41
    %v43 = vmul.f32 %v36, %v42
    %v44 = vadd.f32 %v40, %v43
    %s45 = sld [smem:[#allocation2 + $0x2]]
    %v46 = vstv %s45
    %v47 = vmul.f32 %v37, %v46
    %v48 = vadd.f32 %v44, %v47
    %s49 = sld [smem:[#allocation2 + $0x9]]
    %v50 = vstv %s49
    %v51 = vadd.f32 %v48, %v50
    %v52 = vmul.f32 %v51, 0.5
    %v53 = vmul.f32 %v51, %v51
    %v54 = vmul.f32 %v53, %v51
    %v55 = vmul.f32 %v54, 0.044715
    %v56 = vadd.f32 %v51, %v55
    %v57 = vmul.f32 %v56, 0.7978846
    %v58 = vtanh.pop %v57
    %v59 = vadd.f32 %v58, 1.0
    %v60 = vmul.f32 %v52, %v59
    %s61 = sld [smem:[#allocation2 + $0x3]]
    %v62 = vstv %s61
    %v63 = vmul.f32 %v35, %v62
    %s64 = sld [smem:[#allocation2 + $0x4]]
    %v65 = vstv %s64
    %v66 = vmul.f32 %v36, %v65
    %v67 = vadd.f32 %v63, %v66
    %s68 = sld [smem:[#allocation2 + $0x5]]
    %v69 = vstv %s68
    %v70 = vmul.f32 %v37, %v69
    %v71 = vadd.f32 %v67, %v70
    %s72 = sld [smem:[#allocation2 + $0xa]]
    %v73 = vstv %s72
    %v74 = vadd.f32 %v71, %v73
    %v75 = vmul.f32 %v74, 0.5
    %v76 = vmul.f32 %v74, %v74
    %v77 = vmul.f32 %v76, %v74
    %v78 = vmul.f32 %v77, 0.044715
    %v79 = vadd.f32 %v74, %v78
    %v80 = vmul.f32 %v79, 0.7978846
    %v81 = vtanh.pop %v80
    %v82 = vadd.f32 %v81, 1.0
    %v83 = vmul.f32 %v75, %v82
    %s84 = sld [smem:[#allocation2 + $0x6]]
    %v85 = vstv %s84
    %v86 = vmul.f32 %v35, %v85
    %s87 = sld [smem:[#allocation2 + $0x7]]
    %v88 = vstv %s87
    %v89 = vmul.f32 %v36, %v88
    %v90 = vadd.f32 %v86, %v89
    %s91 = sld [smem:[#allocation2 + $0x8]]
    %v92 = vstv %s91
    %v93 = vmul.f32 %v37, %v92
    %v94 = vadd.f32 %v90, %v93
    %s95 = sld [smem:[#allocation2 + $0xb]]
    %v96 = vstv %s95
    %v97 = vadd.f32 %v94, %v96
    %v98 = vmul.f32 %v97, 0.5
    %v99 = vmul.f32 %v97, %v97
    %v100 = vmul.f32 %v99, %v97
    %v101 = vmul.f32 %v100, 0.044715
    %v102 = vadd.f32 %v97, %v101
    %v103 = vmul.f32 %v102, 0.7978846
    %v104 = vtanh.pop %v103
    %v105 = vadd.f32 %v104, 1.0
    %v106 = vmul.f32 %v98, %v105
    %v107 = vadd.f32 %v60, %v35
    %v108 = vadd.f32 %v83, %v36
    %v109 = vadd.f32 %v106, %v37
    %s110 = sld [smem:[#allocation2 + $0xc]]
    %v111 = vstv %s110
    %v112 = vmul.f32 %v107, %v111
    %s113 = sld [smem:[#allocation2 + $0xd]]
    %v114 = vstv %s113
    %v115 = vmul.f32 %v108, %v114
    %v116 = vadd.f32 %v112, %v115
    %s117 = sld [smem:[#allocation2 + $0xe]]
    %v118 = vstv %s117
    %v119 = vmul.f32 %v109, %v118
    %v120 = vadd.f32 %v116, %v119
    %s121 = sld [smem:[#allocation2 + $0x15]]
    %v122 = vstv %s121
    %v123 = vadd.f32 %v120, %v122
    %v124 = vmul.f32 %v123, 0.5
    %v125 = vmul.f32 %v123, %v123
    %v126 = vmul.f32 %v125, %v123
    %v127 = vmul.f32 %v126, 0.044715
    %v128 = vadd.f32 %v123, %v127
    %v129 = vmul.f32 %v128, 0.7978846
    %v130 = vtanh.pop %v129
    %v131 = vadd.f32 %v130, 1.0
    %v132 = vmul.f32 %v124, %v131
    %s133 = sld [smem:[#allocation2 + $0xf]]
    %v134 = vstv %s133
    %v135 = vmul.f32 %v107, %v134
    %s136 = sld [smem:[#allocation2 + $0x10]]
    %v137 = vstv %s136
    %v138 = vmul.f32 %v108, %v137
    %v139 = vadd.f32 %v135, %v138
    %s140 = sld [smem:[#allocation2 + $0x11]]
    %v141 = vstv %s140
    %v142 = vmul.f32 %v109, %v141
    %v143 = vadd.f32 %v139, %v142
    %s144 = sld [smem:[#allocation2 + $0x16]]
    %v145 = vstv %s144
    %v146 = vadd.f32 %v143, %v145
    %v147 = vmul.f32 %v146, 0.5
    %v148 = vmul.f32 %v146, %v146
    %v149 = vmul.f32 %v148, %v146
    %v150 = vmul.f32 %v149, 0.044715
    %v151 = vadd.f32 %v146, %v150
    %v152 = vmul.f32 %v151, 0.7978846
    %v153 = vtanh.pop %v152
    %v154 = vadd.f32 %v153, 1.0
    %v155 = vmul.f32 %v147, %v154
    %s156 = sld [smem:[#allocation2 + $0x12]]
    %v157 = vstv %s156
    %v158 = vmul.f32 %v107, %v157
    %s159 = sld [smem:[#allocation2 + $0x13]]
    %v160 = vstv %s159
    %v161 = vmul.f32 %v108, %v160
    %v162 = vadd.f32 %v158, %v161
    %s163 = sld [smem:[#allocation2 + $0x14]]
    %v164 = vstv %s163
    %v165 = vmul.f32 %v109, %v164
    %v166 = vadd.f32 %v162, %v165
    %s167 = sld [smem:[#allocation2 + $0x17]]
    %v168 = vstv %s167
    %v169 = vadd.f32 %v166, %v168
    %v170 = vmul.f32 %v169, 0.5
    %v171 = vmul.f32 %v169, %v169
    %v172 = vmul.f32 %v171, %v169
    %v173 = vmul.f32 %v172, 0.044715
    %v174 = vadd.f32 %v169, %v173
    %v175 = vmul.f32 %v174, 0.7978846
    %v176 = vtanh.pop %v175
    %v177 = vadd.f32 %v176, 1.0
    %v178 = vmul.f32 %v170, %v177
    %v179 = vadd.f32 %v132, %v107
    %v180 = vadd.f32 %v155, %v108
    %v181 = vadd.f32 %v178, %v109
    %s182 = sld [smem:[#allocation2 + $0x18]]
    %v183 = vstv %s182
    %v184 = vmul.f32 %v179, %v183
    %s185 = sld [smem:[#allocation2 + $0x19]]
    %v186 = vstv %s185
    %v187 = vmul.f32 %v180, %v186
    %v188 = vadd.f32 %v184, %v187
    %s189 = sld [smem:[#allocation2 + $0x1a]]
    %v190 = vstv %s189
    %v191 = vmul.f32 %v181, %v190
    %v192 = vadd.f32 %v188, %v191
    %s193 = sld [smem:[#allocation2 + $0x21]]
    %v194 = vstv %s193
    %v195 = vadd.f32 %v192, %v194
    %v196 = vmul.f32 %v195, 0.5
    %v197 = vmul.f32 %v195, %v195
    %v198 = vmul.f32 %v197, %v195
    %v199 = vmul.f32 %v198, 0.044715
    %v200 = vadd.f32 %v195, %v199
    %v201 = vmul.f32 %v200, 0.7978846
    %v202 = vtanh.pop %v201
    %v203 = vadd.f32 %v202, 1.0
    %v204 = vmul.f32 %v196, %v203
    %s205 = sld [smem:[#allocation2 + $0x1b]]
    %v206 = vstv %s205
    %v207 = vmul.f32 %v179, %v206
    %s208 = sld [smem:[#allocation2 + $0x1c]]
    %v209 = vstv %s208
    %v210 = vmul.f32 %v180, %v209
    %v211 = vadd.f32 %v207, %v210
    %s212 = sld [smem:[#allocation2 + $0x1d]]
    %v213 = vstv %s212
    %v214 = vmul.f32 %v181, %v213
    %v215 = vadd.f32 %v211, %v214
    %s216 = sld [smem:[#allocation2 + $0x22]]
    %v217 = vstv %s216
    %v218 = vadd.f32 %v215, %v217
    %v219 = vmul.f32 %v218, 0.5
    %v220 = vmul.f32 %v218, %v218
    %v221 = vmul.f32 %v220, %v218
    %v222 = vmul.f32 %v221, 0.044715
    %v223 = vadd.f32 %v218, %v222
    %v224 = vmul.f32 %v223, 0.7978846
    %v225 = vtanh.pop %v224
    %v226 = vadd.f32 %v225, 1.0
    %v227 = vmul.f32 %v219, %v226
    %s228 = sld [smem:[#allocation2 + $0x1e]]
    %v229 = vstv %s228
    %v230 = vmul.f32 %v179, %v229
    %s231 = sld [smem:[#allocation2 + $0x1f]]
    %v232 = vstv %s231
    %v233 = vmul.f32 %v180, %v232
    %v234 = vadd.f32 %v230, %v233
    %s235 = sld [smem:[#allocation2 + $0x20]]
    %v236 = vstv %s235
    %v237 = vmul.f32 %v181, %v236
    %v238 = vadd.f32 %v234, %v237
    %s239 = sld [smem:[#allocation2 + $0x23]]
    %v240 = vstv %s239
    %v241 = vadd.f32 %v238, %v240
    %v242 = vmul.f32 %v241, 0.5
    %v243 = vmul.f32 %v241, %v241
    %v244 = vmul.f32 %v243, %v241
    %v245 = vmul.f32 %v244, 0.044715
    %v246 = vadd.f32 %v241, %v245
    %v247 = vmul.f32 %v246, 0.7978846
    %v248 = vtanh.pop %v247
    %v249 = vadd.f32 %v248, 1.0
    %v250 = vmul.f32 %v242, %v249
    %v251 = vadd.f32 %v204, %v179
    %v252 = vadd.f32 %v227, %v180
    %v253 = vadd.f32 %v250, %v181
    %s254 = sld [smem:[#allocation2 + $0x24]]
    %v255 = vstv %s254
    %v256 = vmul.f32 %v251, %v255
    %s257 = sld [smem:[#allocation2 + $0x25]]
    %v258 = vstv %s257
    %v259 = vmul.f32 %v252, %v258
    %v260 = vadd.f32 %v256, %v259
    %s261 = sld [smem:[#allocation2 + $0x26]]
    %v262 = vstv %s261
    %v263 = vmul.f32 %v253, %v262
    %v264 = vadd.f32 %v260, %v263
    %s265 = sld [smem:[#allocation2 + $0x2d]]
    %v266 = vstv %s265
    %v267 = vadd.f32 %v264, %v266
    %v268 = vmul.f32 %v267, 0.5
    %v269 = vmul.f32 %v267, %v267
    %v270 = vmul.f32 %v269, %v267
    %v271 = vmul.f32 %v270, 0.044715
    %v272 = vadd.f32 %v267, %v271
    %v273 = vmul.f32 %v272, 0.7978846
    %v274 = vtanh.pop %v273
    %v275 = vadd.f32 %v274, 1.0
    %v276 = vmul.f32 %v268, %v275
    %s277 = sld [smem:[#allocation2 + $0x27]]
    %v278 = vstv %s277
    %v279 = vmul.f32 %v251, %v278
    %s280 = sld [smem:[#allocation2 + $0x28]]
    %v281 = vstv %s280
    %v282 = vmul.f32 %v252, %v281
    %v283 = vadd.f32 %v279, %v282
    %s284 = sld [smem:[#allocation2 + $0x29]]
    %v285 = vstv %s284
    %v286 = vmul.f32 %v253, %v285
    %v287 = vadd.f32 %v283, %v286
    %s288 = sld [smem:[#allocation2 + $0x2e]]
    %v289 = vstv %s288
    %v290 = vadd.f32 %v287, %v289
    %v291 = vmul.f32 %v290, 0.5
    %v292 = vmul.f32 %v290, %v290
    %v293 = vmul.f32 %v292, %v290
    %v294 = vmul.f32 %v293, 0.044715
    %v295 = vadd.f32 %v290, %v294
    %v296 = vmul.f32 %v295, 0.7978846
    %v297 = vtanh.pop %v296
    %v298 = vadd.f32 %v297, 1.0
    %v299 = vmul.f32 %v291, %v298
    %s300 = sld [smem:[#allocation2 + $0x2a]]
    %v301 = vstv %s300
    %v302 = vmul.f32 %v251, %v301
    %s303 = sld [smem:[#allocation2 + $0x2b]]
    %v304 = vstv %s303
    %v305 = vmul.f32 %v252, %v304
    %v306 = vadd.f32 %v302, %v305
    %s307 = sld [smem:[#allocation2 + $0x2c]]
    %v308 = vstv %s307
    %v309 = vmul.f32 %v253, %v308
    %v310 = vadd.f32 %v306, %v309
    %s311 = sld [smem:[#allocation2 + $0x2f]]
    %v312 = vstv %s311
    %v313 = vadd.f32 %v310, %v312
    %v314 = vmul.f32 %v313, 0.5
    %v315 = vmul.f32 %v313, %v313
    %v316 = vmul.f32 %v315, %v313
    %v317 = vmul.f32 %v316, 0.044715
    %v318 = vadd.f32 %v313, %v317
    %v319 = vmul.f32 %v318, 0.7978846
    %v320 = vtanh.pop %v319
    %v321 = vadd.f32 %v320, 1.0
    %v322 = vmul.f32 %v314, %v321
    %v323 = vadd.f32 %v276, %v251
    %v324 = vadd.f32 %v299, %v252
    %v325 = vadd.f32 %v322, %v253
    %s326 = sld [smem:[#allocation2 + $0x30]]
    %v327 = vstv %s326
    %v328 = vmul.f32 %v323, %v327
    %s329 = sld [smem:[#allocation2 + $0x31]]
    %v330 = vstv %s329
    %v331 = vmul.f32 %v324, %v330
    %v332 = vadd.f32 %v328, %v331
    %s333 = sld [smem:[#allocation2 + $0x32]]
    %v334 = vstv %s333
    %v335 = vmul.f32 %v325, %v334
    %v336 = vadd.f32 %v332, %v335
    %s337 = sld [smem:[#allocation2 + $0x33]]
    %v338 = vstv %s337
    %v339 = vadd.f32 %v336, %v338
    %v340 = vmul.f32 %v339, 0.5
    %v341 = vmul.f32 %v339, %v339
    %v342 = vmul.f32 %v341, %v339
    %v343 = vmul.f32 %v342, 0.044715
    %v344 = vadd.f32 %v339, %v343
    %v345 = vmul.f32 %v344, 0.7978846
    %v346 = vtanh.pop %v345
    %v347 = vadd.f32 %v346, 1.0
    %v348 = vmul.f32 %v340, %v347
    %349 = vst [vmem:[#allocation7] sm:$0x1] %v348
    // Predicated region
    $region18: #{tpu_custom_call.1} parent=1 // pred_check
      _
    $region19: #{tpu_custom_call.1} parent=1 // pred_check_branch
      %351 = sbr.rel (0) target = $region21
    $region20: #{tpu_custom_call.1} parent=1 // pred_region
      %s353 = ssub.s32 16, 16
      %354 = vsyncadd [#allocation4], %s353
      %s356 = sshll.u32 [#allocation7], 4
      %s357 = int_to_ptr.vmem [resolvable:$true] %s356
      %359 = dma.vmem_to_hbm [thread:$0]  %s357, 16, %s2, [#allocation4]
    $region21: #{tpu_custom_call.1} parent=1 // pred_fallthru
      _
    // Predicated region
    $region22: #{tpu_custom_call.1} parent=1 // pred_check
      _
    $region23: #{tpu_custom_call.1} parent=1 // pred_check_branch
      %361 = sbr.rel (0) target = $region25
    $region24: #{tpu_custom_call.1} parent=1 // pred_region
      %362 = dma.done [#allocation4], 16
    $region25: #{tpu_custom_call.1} parent=1 // pred_fallthru
      _
    %363 = vsyncpa [#allocation3], 1
    %364 = vsyncpa [#allocation4], 1
    %365 = vsyncpa [#allocation5], 1

</llo_original>
